<compile_context>
chip_gen: v5e
topology: v5e:2x2
jax: 0.10.0
libtpu: 0.0.40
codegen_flags: <defaults>
</compile_context>

<pallas_src>
import jax
import jax.numpy as jnp
from jax.experimental import pallas as pl
from jax.experimental.pallas import tpu as pltpu

IN_CH = 128          # forced by x.view(B, 128, 1, 1)
FC_IN = 128          # forced by nn.Linear(128, out) -> blocks[-1] must be 128
BN_EPS = 1e-5        # nn.BatchNorm2d default
LANES = 128
SUBLANES_BF16 = 16   # bf16 sublane packing


def _round_up(x, m):
    return ((x + m - 1) // m) * m


def _cdiv(a, b):
    return -(-a // b)


# -----------------------------------------------------------------------------
# Kernel
# -----------------------------------------------------------------------------
def make_fv_kernel(num_hidden_layers):
    """Kernel over one (TM, IN_CH) row-tile.

    refs = (x_ref,
            w0_ref, b0_ref, ..., w{L-1}_ref, b{L-1}_ref,   # folded Bottleneck2
            wf_ref, bf_ref,                                # fc (Linear, padded)
            o_ref)
    Weights are pre-transposed to (C_in, C_out) and stored bf16; biases are
    (1, C_out) f32.  Output C_out is padded to a multiple of 128 lanes.
    """

    def kernel(*refs):
        x_ref = refs[0]
        o_ref = refs[-1]
        params = refs[1:-1]

        h = x_ref[...]                          # (TM, IN_CH) bf16
        for i in range(num_hidden_layers):
            w = params[2 * i][...]              # (C_in, C_out) bf16
            b = params[2 * i + 1][...]          # (1, C_out)   f32
            a = jnp.dot(h, w, preferred_element_type=jnp.float32) + b
            a = jnp.clip(a, 0.0, 6.0)           # ReLU6 in f32
            h = a.astype(jnp.bfloat16)          # feed next MXU op in bf16

        wf = params[-2][...]                    # (FC_IN, OUT_pad) bf16
        bf = params[-1][...]                    # (1, OUT_pad)     f32
        y = jnp.dot(h, wf, preferred_element_type=jnp.float32) + bf
        # sigmoid: exp -> EUP, approx reciprocal -> EUP (no VALU divide)
        e = jnp.exp(-y)
        o_ref[...] = pl.reciprocal(1.0 + e, approx=True).astype(o_ref.dtype)

    return kernel


# -----------------------------------------------------------------------------
# Parameter folding (done ONCE, outside the per-call path)
# -----------------------------------------------------------------------------
def prepare_fv_params(raw):
    """Fold Conv2d + BatchNorm2d (eval mode) into (W^T_eff bf16, b_eff f32) per
    layer; pre-transpose and lane-pad the fc weight/bias to a multiple of 128
    output channels.  Call once at parameter-load time."""
    layer_params = []
    for (cw, cb, g, beta, mean, var) in raw["bottlenecks"]:
        scale = g / jnp.sqrt(var + BN_EPS)                       # (C_out,)
        w_eff = cw * scale[:, None]                              # (C_out, C_in)
        b_eff = (cb - mean) * scale + beta                       # (C_out,)
        layer_params.append(
            (jnp.transpose(w_eff).astype(jnp.bfloat16),          # (C_in, C_out) bf16
             b_eff.reshape(1, -1).astype(jnp.float32)))          # (1, C_out)   f32

    out_dim = raw["fc_w"].shape[0]
    out_pad = _round_up(out_dim, LANES)                          # lane-dense output
    fc_wt = jnp.transpose(raw["fc_w"])                           # (FC_IN, OUT)
    fc_wt = jnp.pad(fc_wt, ((0, 0), (0, out_pad - out_dim)))
    fc_wt = fc_wt.astype(jnp.bfloat16)                           # (FC_IN, OUT_pad)
    fc_b = jnp.pad(raw["fc_b"].reshape(1, -1),
                   ((0, 0), (0, out_pad - out_dim))).astype(jnp.float32)
    return layer_params, fc_wt, fc_b, out_dim


# -----------------------------------------------------------------------------
# Forward wrapper
# -----------------------------------------------------------------------------
def fv_forward(x, layer_params, fc_wt, fc_b, out_dim, *, tile_m=1024,
               use_core_parallel=False):
    """x: (B, 128) float32 (== x.view(B, 128, 1, 1) with the 1x1 spatial dims
    dropped).  layer_params/fc_wt/fc_b/out_dim: output of prepare_fv_params.
    use_core_parallel=True shards the row axis across TensorCores (v7x)."""
    B = x.shape[0]
    M = B
    out_pad = fc_wt.shape[1]                    # lane-dense (multiple of 128)

    # Adaptive row tiling: tiles are 16-row aligned (bf16 sublane packing) and
    # rebalanced so padding never exceeds 15 rows (avoids B=TM+1 -> 2*TM pad).
    M16 = _round_up(max(M, SUBLANES_BF16), SUBLANES_BF16)
    TM = min(tile_m, M16)
    num_tiles = _cdiv(M16, TM)
    TM = _round_up(_cdiv(M16, num_tiles), SUBLANES_BF16)
    M_pad = TM * num_tiles

    x2d = x.reshape(B, IN_CH).astype(jnp.bfloat16)
    if M_pad != M:
        x2d = jnp.pad(x2d, ((0, M_pad - M), (0, 0)))

    num_layers = len(layer_params)
    kernel = make_fv_kernel(num_layers)

    # BlockSpecs: x/out tiles move with the grid; weights/biases are constant
    # (grid-invariant -> stay VMEM resident).
    in_specs = [pl.BlockSpec((TM, IN_CH), lambda i: (i, 0))]
    flat_params = []
    for (wt, b) in layer_params:
        in_specs.append(pl.BlockSpec(wt.shape, lambda i: (0, 0)))
        in_specs.append(pl.BlockSpec(b.shape, lambda i: (0, 0)))
        flat_params += [wt, b]
    in_specs.append(pl.BlockSpec(fc_wt.shape, lambda i: (0, 0)))
    in_specs.append(pl.BlockSpec(fc_b.shape, lambda i: (0, 0)))
    flat_params += [fc_wt, fc_b]

    out_specs = pl.BlockSpec((TM, out_pad), lambda i: (i, 0))

    # Cost hint for XLA's scheduler.
    flops = 0
    c_in = IN_CH
    for (wt, _) in layer_params:
        flops += 2 * M_pad * c_in * wt.shape[1]
        c_in = wt.shape[1]
    flops += 2 * M_pad * FC_IN * out_pad
    bytes_accessed = (M_pad * IN_CH * 2                    # x (bf16)
                      + M_pad * out_pad * 4                # out (f32)
                      + sum(int(a.size) * a.dtype.itemsize for a in flat_params))
    cost = pl.CostEstimate(
        flops=int(flops),
        transcendentals=int(2 * M_pad * out_pad),          # exp + vrcp
        bytes_accessed=int(bytes_accessed),
    )

    if use_core_parallel:
        dim_sem = (pltpu.CORE_PARALLEL,)                   # v7x: shard rows over 2 TCs
    else:
        dim_sem = ("parallel",)

    out2d = pl.pallas_call(
        kernel,
        out_shape=jax.ShapeDtypeStruct((M_pad, out_pad), jnp.float32),
        grid_spec=pltpu.PrefetchScalarGridSpec(
            num_scalar_prefetch=0,
            grid=(num_tiles,),
            in_specs=in_specs,
            out_specs=out_specs,
        ),
        compiler_params=pltpu.CompilerParams(dimension_semantics=dim_sem),
        cost_estimate=cost,
    )(x2d, *flat_params)

    return out2d[:M, :out_dim]


# -----------------------------------------------------------------------------
# Pure-JAX reference (unfolded params, eval-mode BatchNorm, f32 throughout)
# -----------------------------------------------------------------------------
def reference_forward(x, raw):
    B = x.shape[0]
    h = x.reshape(B, IN_CH)
    for (cw, cb, g, beta, mean, var) in raw["bottlenecks"]:
        h = h @ cw.T + cb                                   # Conv2d 1x1
        h = (h - mean) / jnp.sqrt(var + BN_EPS) * g + beta  # BatchNorm2d (eval)
        h = jnp.clip(h, 0.0, 6.0)                           # ReLU6
    y = h @ raw["fc_w"].T + raw["fc_b"]                     # Linear
    return jax.nn.sigmoid(y)                                # Sigmoid


# -----------------------------------------------------------------------------
if __name__ == "__main__":
    key = jax.random.PRNGKey(0)

    # Small, module-consistent shapes: FV(in_ch=128, blocks=[256, 128], out=64)
    blocks = [256, 128]
    out_dim = 64
    B = 22                                  # not a multiple of 16 -> exercises padding

    keys = jax.random.split(key, 1 + 6 * len(blocks) + 2)
    kx = keys[0]
    x = jax.random.normal(kx, (B, IN_CH), dtype=jnp.float32)

    raw = {"bottlenecks": []}
    c_in = IN_CH
    ki = 1
    for c_out in blocks:
        cw = jax.random.normal(keys[ki], (c_out, c_in), jnp.float32) * (2.0 / c_in) ** 0.5
        cb = jax.random.normal(keys[ki + 1], (c_out,), jnp.float32) * 0.1
        g = 1.0 + 0.1 * jax.random.normal(keys[ki + 2], (c_out,), jnp.float32)
        beta = 0.1 * jax.random.normal(keys[ki + 3], (c_out,), jnp.float32)
        mean = 0.1 * jax.random.normal(keys[ki + 4], (c_out,), jnp.float32)
        var = jax.random.uniform(keys[ki + 5], (c_out,), jnp.float32, 0.5, 1.5)
        raw["bottlenecks"].append((cw, cb, g, beta, mean, var))
        c_in = c_out
        ki += 6
    raw["fc_w"] = jax.random.normal(keys[ki], (out_dim, FC_IN), jnp.float32) * 0.01
    raw["fc_b"] = jnp.zeros((out_dim,), jnp.float32)

    # Fold params once (hoisted out of the per-call path).
    layer_params, fc_wt, fc_b, out_dim_p = prepare_fv_params(raw)

    out = fv_forward(x, layer_params, fc_wt, fc_b, out_dim_p)
    out = jax.block_until_ready(out)

    ref = reference_forward(x, raw)
    assert out.shape == (B, out_dim), out.shape
    # bf16 matmul inputs + approx reciprocal -> looser tolerance than pure f32.
    assert jnp.allclose(out, ref, atol=1e-2, rtol=1e-2), "mismatch vs reference"

    print("KERNEL_OK")
</pallas_src>

<mosaic_0001>
module attributes {stable_mosaic.version = 11 : i64} {
  func.func @kernel(%arg0: i32, %arg1: memref<32x128xbf16, #tpu.memory_space<vmem>>, %arg2: memref<128x256xbf16, #tpu.memory_space<vmem>>, %arg3: memref<1x256xf32, #tpu.memory_space<vmem>>, %arg4: memref<256x128xbf16, #tpu.memory_space<vmem>>, %arg5: memref<1x128xf32, #tpu.memory_space<vmem>>, %arg6: memref<128x128xbf16, #tpu.memory_space<vmem>>, %arg7: memref<1x128xf32, #tpu.memory_space<vmem>>, %arg8: memref<32x128xf32, #tpu.memory_space<vmem>>) attributes {dimension_semantics = [#tpu.dimension_semantics<parallel>], iteration_bounds = array<i64: 1>, scalar_prefetch = 0 : i64, scratch_operands = 0 : i64, tpu.core_type = #tpu.core_type<tc>, window_params = [{transform_indices = @transform_0, window_bounds = array<i64: 32, 128>}, {pipeline_mode = #tpu.pipeline_mode<synchronous>, transform_indices = @transform_1, window_bounds = array<i64: 128, 256>}, {pipeline_mode = #tpu.pipeline_mode<synchronous>, transform_indices = @transform_2, window_bounds = array<i64: 1, 256>}, {pipeline_mode = #tpu.pipeline_mode<synchronous>, transform_indices = @transform_3, window_bounds = array<i64: 256, 128>}, {pipeline_mode = #tpu.pipeline_mode<synchronous>, transform_indices = @transform_4, window_bounds = array<i64: 1, 128>}, {pipeline_mode = #tpu.pipeline_mode<synchronous>, transform_indices = @transform_5, window_bounds = array<i64: 128, 128>}, {pipeline_mode = #tpu.pipeline_mode<synchronous>, transform_indices = @transform_6, window_bounds = array<i64: 1, 128>}, {transform_indices = @transform_7, window_bounds = array<i64: 32, 128>}]} {
    %c0 = arith.constant 0 : index
    %c0_0 = arith.constant 0 : index
    %0 = vector.load %arg1[%c0, %c0_0] : memref<32x128xbf16, #tpu.memory_space<vmem>>, vector<32x128xbf16>
    %c0_1 = arith.constant 0 : index
    %c0_2 = arith.constant 0 : index
    %1 = vector.load %arg2[%c0_1, %c0_2] : memref<128x256xbf16, #tpu.memory_space<vmem>>, vector<128x256xbf16>
    %c0_3 = arith.constant 0 : index
    %c0_4 = arith.constant 0 : index
    %2 = vector.load %arg3[%c0_3, %c0_4] : memref<1x256xf32, #tpu.memory_space<vmem>>, vector<1x256xf32>
    %cst = arith.constant dense<0.000000e+00> : vector<32x256xf32>
    %3 = tpu.matmul %0, %1, %cst {dimension_numbers = #tpu.dot_dimension_numbers<[1], [0], [0], [1], [0, 0, 1, 1], [], []>} : vector<32x128xbf16>, vector<128x256xbf16>, vector<32x256xf32> -> vector<32x256xf32>
    %4 = vector.broadcast %2 : vector<1x256xf32> to vector<32x256xf32>
    %5 = arith.addf %3, %4 : vector<32x256xf32>
    %cst_5 = arith.constant 0.000000e+00 : f32
    %cst_6 = arith.constant 6.000000e+00 : f32
    %6 = vector.broadcast %cst_5 : f32 to vector<32x256xf32>
    %7 = arith.maximumf %6, %5 : vector<32x256xf32>
    %8 = vector.broadcast %cst_6 : f32 to vector<32x256xf32>
    %9 = arith.minimumf %8, %7 : vector<32x256xf32>
    %10 = arith.truncf %9 : vector<32x256xf32> to vector<32x256xbf16>
    %c0_7 = arith.constant 0 : index
    %c0_8 = arith.constant 0 : index
    %11 = vector.load %arg4[%c0_7, %c0_8] : memref<256x128xbf16, #tpu.memory_space<vmem>>, vector<256x128xbf16>
    %c0_9 = arith.constant 0 : index
    %c0_10 = arith.constant 0 : index
    %12 = vector.load %arg5[%c0_9, %c0_10] : memref<1x128xf32, #tpu.memory_space<vmem>>, vector<1x128xf32>
    %cst_11 = arith.constant dense<0.000000e+00> : vector<32x128xf32>
    %13 = tpu.matmul %10, %11, %cst_11 {dimension_numbers = #tpu.dot_dimension_numbers<[1], [0], [0], [1], [0, 0, 1, 1], [], []>} : vector<32x256xbf16>, vector<256x128xbf16>, vector<32x128xf32> -> vector<32x128xf32>
    %14 = vector.broadcast %12 : vector<1x128xf32> to vector<32x128xf32>
    %15 = arith.addf %13, %14 : vector<32x128xf32>
    %cst_12 = arith.constant 0.000000e+00 : f32
    %cst_13 = arith.constant 6.000000e+00 : f32
    %16 = vector.broadcast %cst_12 : f32 to vector<32x128xf32>
    %17 = arith.maximumf %16, %15 : vector<32x128xf32>
    %18 = vector.broadcast %cst_13 : f32 to vector<32x128xf32>
    %19 = arith.minimumf %18, %17 : vector<32x128xf32>
    %20 = arith.truncf %19 : vector<32x128xf32> to vector<32x128xbf16>
    %c0_14 = arith.constant 0 : index
    %c0_15 = arith.constant 0 : index
    %21 = vector.load %arg6[%c0_14, %c0_15] : memref<128x128xbf16, #tpu.memory_space<vmem>>, vector<128x128xbf16>
    %c0_16 = arith.constant 0 : index
    %c0_17 = arith.constant 0 : index
    %22 = vector.load %arg7[%c0_16, %c0_17] : memref<1x128xf32, #tpu.memory_space<vmem>>, vector<1x128xf32>
    %cst_18 = arith.constant dense<0.000000e+00> : vector<32x128xf32>
    %23 = tpu.matmul %20, %21, %cst_18 {dimension_numbers = #tpu.dot_dimension_numbers<[1], [0], [0], [1], [0, 0, 1, 1], [], []>} : vector<32x128xbf16>, vector<128x128xbf16>, vector<32x128xf32> -> vector<32x128xf32>
    %24 = vector.broadcast %22 : vector<1x128xf32> to vector<32x128xf32>
    %25 = arith.addf %23, %24 : vector<32x128xf32>
    %cst_19 = arith.constant 0.000000e+00 : f32
    %26 = vector.broadcast %cst_19 : f32 to vector<32x128xf32>
    %27 = arith.subf %26, %25 : vector<32x128xf32>
    %28 = math.exp %27 : vector<32x128xf32>
    %cst_20 = arith.constant 1.000000e+00 : f32
    %29 = vector.broadcast %cst_20 : f32 to vector<32x128xf32>
    %30 = arith.addf %29, %28 : vector<32x128xf32>
    %31 = tpu.reciprocal %30 {approx = true} : vector<32x128xf32> -> vector<32x128xf32>
    %c0_21 = arith.constant 0 : index
    %c0_22 = arith.constant 0 : index
    %32 = vector.load %arg8[%c0_21, %c0_22] : memref<32x128xf32, #tpu.memory_space<vmem>>, vector<32x128xf32>
    tpu.vector_store %arg8[%c0_21, %c0_22], %31 {strides = array<i32>} : memref<32x128xf32, #tpu.memory_space<vmem>>, vector<32x128xf32>,
    return
  }
  func.func @transform_0(%arg0: i32) -> (i32, i32) {
    %c0_i32 = arith.constant 0 : i32
    %c0_i32_0 = arith.constant 0 : i32
    return %arg0, %c0_i32 : i32, i32
  }
  func.func @transform_1(%arg0: i32) -> (i32, i32) {
    %c0_i32 = arith.constant 0 : i32
    %c0_i32_0 = arith.constant 0 : i32
    %c0_i32_1 = arith.constant 0 : i32
    return %c0_i32, %c0_i32_0 : i32, i32
  }
  func.func @transform_2(%arg0: i32) -> (i32, i32) {
    %c0_i32 = arith.constant 0 : i32
    %c0_i32_0 = arith.constant 0 : i32
    %c0_i32_1 = arith.constant 0 : i32
    return %c0_i32, %c0_i32_0 : i32, i32
  }
  func.func @transform_3(%arg0: i32) -> (i32, i32) {
    %c0_i32 = arith.constant 0 : i32
    %c0_i32_0 = arith.constant 0 : i32
    %c0_i32_1 = arith.constant 0 : i32
    return %c0_i32, %c0_i32_0 : i32, i32
  }
  func.func @transform_4(%arg0: i32) -> (i32, i32) {
    %c0_i32 = arith.constant 0 : i32
    %c0_i32_0 = arith.constant 0 : i32
    %c0_i32_1 = arith.constant 0 : i32
    return %c0_i32, %c0_i32_0 : i32, i32
  }
  func.func @transform_5(%arg0: i32) -> (i32, i32) {
    %c0_i32 = arith.constant 0 : i32
    %c0_i32_0 = arith.constant 0 : i32
    %c0_i32_1 = arith.constant 0 : i32
    return %c0_i32, %c0_i32_0 : i32, i32
  }
  func.func @transform_6(%arg0: i32) -> (i32, i32) {
    %c0_i32 = arith.constant 0 : i32
    %c0_i32_0 = arith.constant 0 : i32
    %c0_i32_1 = arith.constant 0 : i32
    return %c0_i32, %c0_i32_0 : i32, i32
  }
  func.func @transform_7(%arg0: i32) -> (i32, i32) {
    %c0_i32 = arith.constant 0 : i32
    %c0_i32_0 = arith.constant 0 : i32
    return %arg0, %c0_i32 : i32, i32
  }
}

</mosaic_0001>

<llo_original>
// kernel: tpu_custom_call.1
$region0: #{tpu_custom_call.1}
  #allocation0 [shape = 'u32[]', space=smem, size = 0x4, offset = 0x4, fixed_abs, tag = 'smem constant byte address 0x4 - core index']
  #allocation1 [shape = 'u32[72,128]{1,0:T(1,128)}', space=vmem, size = 0x9000, scoped, tag = 'internal scratch']
  %s0 = inlined_call_operand.hbm [shape: bf16[32,128], index: 0, kind: input, shape index: {}]
  %s1 = inlined_call_operand.hbm [shape: bf16[128,256], index: 1, kind: input, shape index: {}]
  %s2 = inlined_call_operand.hbm [shape: f32[1,256], index: 2, kind: input, shape index: {}]
  %s3 = inlined_call_operand.hbm [shape: bf16[256,128], index: 3, kind: input, shape index: {}]
  %s4 = inlined_call_operand.vmem [shape: f32[1,128], index: 4, kind: input, shape index: {}]
  %s5 = inlined_call_operand.hbm [shape: bf16[128,128], index: 5, kind: input, shape index: {}]
  %s6 = inlined_call_operand.vmem [shape: f32[1,128], index: 6, kind: input, shape index: {}]
  %s7 = inlined_call_operand.hbm [shape: f32[32,128], index: 7, kind: output, shape index: {}]
  %s8 = sld [smem:[#allocation0]]
  $region58: #{tpu_custom_call.1} parent=0
    _
  %s10 = ssub.s32 1, %s8
  %s11 = scalar_select 0, %s10, %s8
  $region1: #{tpu_custom_call.1} parent=0
    #allocation2 [shape = 'u8[8192]{0}', space=vmem, size = 0x2000, scoped, tag = 'input window, operand 0, single buffered']
    #allocation3 [shape = 's32[1]{0}', space=sflag, size = 0x4, scoped, tag = 'scoped memory for tpu_custom_call.1']
    #allocation4 [shape = 's32[1]{0}', space=sflag, size = 0x4, scoped, tag = 'scoped memory for tpu_custom_call.1']
    #allocation5 [shape = 'u8[65536]{0}', space=vmem, size = 0x10000, scoped, tag = 'input window, operand 1, single buffered']
    #allocation6 [shape = 's32[1]{0}', space=sflag, size = 0x4, scoped, tag = 'scoped memory for tpu_custom_call.1']
    #allocation7 [shape = 'u8[1024]{0}', space=vmem, size = 0x400, scoped, tag = 'input window, operand 2, single buffered']
    #allocation8 [shape = 'u8[65536]{0}', space=vmem, size = 0x10000, scoped, tag = 'input window, operand 3, single buffered']
    #allocation9 [shape = 's32[1]{0}', space=sflag, size = 0x4, scoped, tag = 'scoped memory for tpu_custom_call.1']
    #allocation10 [shape = 'u8[32768]{0}', space=vmem, size = 0x8000, scoped, tag = 'input window, operand 5, single buffered']
    #allocation11 [shape = 'u8[16384]{0}', space=vmem, size = 0x4000, scoped, tag = 'output window, operand 0, single buffered']
    %12 = vsyncpa [#allocation3], 0
    %13 = vsyncpa [#allocation6], 0
    %14 = vsyncpa [#allocation9], 0
    %15 = vsyncpa [#allocation4], 0
    // Predicated region
    $region2: #{tpu_custom_call.1} parent=1 // pred_check
      _
    $region3: #{tpu_custom_call.1} parent=1 // pred_check_branch
      %17 = sbr.rel (0) target = $region5
    $region4: #{tpu_custom_call.1} parent=1 // pred_region
      %19 = vsyncadd [#allocation3], 0
      %s20 = sshll.u32 %s0, 4
      %s21 = int_to_ptr.hbm [resolvable:$true] %s20
      %s22 = sshll.u32 [#allocation2], 4
      %s23 = int_to_ptr.vmem [resolvable:$true] %s22
      %28 = dma.hbm_to_vmem [thread:$0]  %s21, 256, %s23, [#allocation3], 64, 64, 4
    $region5: #{tpu_custom_call.1} parent=1 // pred_fallthru
      _
    // Predicated region
    $region6: #{tpu_custom_call.1} parent=1 // pred_check
      _
    $region7: #{tpu_custom_call.1} parent=1 // pred_check_branch
      %30 = sbr.rel (0) target = $region9
    $region8: #{tpu_custom_call.1} parent=1 // pred_region
      %32 = vsyncadd [#allocation6], 0
      %s33 = sshll.u32 %s1, 4
      %s34 = int_to_ptr.hbm [resolvable:$true] %s33
      %s35 = sshll.u32 [#allocation5], 4
      %s36 = int_to_ptr.vmem [resolvable:$true] %s35
      %41 = dma.hbm_to_vmem [thread:$0]  %s34, 2048, %s36, [#allocation6], 128, 128, 8
    $region9: #{tpu_custom_call.1} parent=1 // pred_fallthru
      _
    // Predicated region
    $region10: #{tpu_custom_call.1} parent=1 // pred_check
      _
    $region11: #{tpu_custom_call.1} parent=1 // pred_check_branch
      %43 = sbr.rel (0) target = $region13
    $region12: #{tpu_custom_call.1} parent=1 // pred_region
      %45 = vsyncadd [#allocation6], 0
      %s47 = sshll.u32 %s2, 4
      %s48 = int_to_ptr.hbm [resolvable:$true] %s47
      %s49 = sshll.u32 [#allocation7], 4
      %s50 = int_to_ptr.vmem [resolvable:$true] %s49
      %52 = dma.hbm_to_vmem [thread:$0]  %s48, 32, %s50, [#allocation6]
    $region13: #{tpu_custom_call.1} parent=1 // pred_fallthru
      _
    // Predicated region
    $region14: #{tpu_custom_call.1} parent=1 // pred_check
      _
    $region15: #{tpu_custom_call.1} parent=1 // pred_check_branch
      %54 = sbr.rel (0) target = $region17
    $region16: #{tpu_custom_call.1} parent=1 // pred_region
      %56 = vsyncadd [#allocation9], 0
      %s57 = sshll.u32 %s3, 4
      %s58 = int_to_ptr.hbm [resolvable:$true] %s57
      %s59 = sshll.u32 [#allocation8], 4
      %s60 = int_to_ptr.vmem [resolvable:$true] %s59
      %65 = dma.hbm_to_vmem [thread:$0]  %s58, 2048, %s60, [#allocation9], 64, 64, 4
    $region17: #{tpu_custom_call.1} parent=1 // pred_fallthru
      _
    // Predicated region
    $region18: #{tpu_custom_call.1} parent=1 // pred_check
      _
    $region19: #{tpu_custom_call.1} parent=1 // pred_check_branch
      %67 = sbr.rel (0) target = $region21
    $region20: #{tpu_custom_call.1} parent=1 // pred_region
      _
    $region21: #{tpu_custom_call.1} parent=1 // pred_fallthru
      _
    // Predicated region
    $region22: #{tpu_custom_call.1} parent=1 // pred_check
      _
    $region23: #{tpu_custom_call.1} parent=1 // pred_check_branch
      %69 = sbr.rel (0) target = $region25
    $region24: #{tpu_custom_call.1} parent=1 // pred_region
      %71 = vsyncadd [#allocation9], 0
      %s72 = sshll.u32 %s5, 4
      %s73 = int_to_ptr.hbm [resolvable:$true] %s72
      %s74 = sshll.u32 [#allocation10], 4
      %s75 = int_to_ptr.vmem [resolvable:$true] %s74
      %80 = dma.hbm_to_vmem [thread:$0]  %s73, 1024, %s75, [#allocation9], 64, 64, 4
    $region25: #{tpu_custom_call.1} parent=1 // pred_fallthru
      _
    // Predicated region
    $region26: #{tpu_custom_call.1} parent=1 // pred_check
      _
    $region27: #{tpu_custom_call.1} parent=1 // pred_check_branch
      %82 = sbr.rel (0) target = $region29
    $region28: #{tpu_custom_call.1} parent=1 // pred_region
      _
    $region29: #{tpu_custom_call.1} parent=1 // pred_fallthru
      _
    // Predicated region
    $region30: #{tpu_custom_call.1} parent=1 // pred_check
      _
    $region31: #{tpu_custom_call.1} parent=1 // pred_check_branch
      %84 = sbr.rel (0) target = $region33
    $region32: #{tpu_custom_call.1} parent=1 // pred_region
      %86 = dma.done [#allocation3], 256
    $region33: #{tpu_custom_call.1} parent=1 // pred_fallthru
      _
    // Predicated region
    $region34: #{tpu_custom_call.1} parent=1 // pred_check
      _
    $region35: #{tpu_custom_call.1} parent=1 // pred_check_branch
      %88 = sbr.rel (0) target = $region37
    $region36: #{tpu_custom_call.1} parent=1 // pred_region
      %90 = dma.done [#allocation6], 2048
    $region37: #{tpu_custom_call.1} parent=1 // pred_fallthru
      _
    // Predicated region
    $region38: #{tpu_custom_call.1} parent=1 // pred_check
      _
    $region39: #{tpu_custom_call.1} parent=1 // pred_check_branch
      %92 = sbr.rel (0) target = $region41
    $region40: #{tpu_custom_call.1} parent=1 // pred_region
      %94 = dma.done [#allocation6], 32
    $region41: #{tpu_custom_call.1} parent=1 // pred_fallthru
      _
    // Predicated region
    $region42: #{tpu_custom_call.1} parent=1 // pred_check
      _
    $region43: #{tpu_custom_call.1} parent=1 // pred_check_branch
      %96 = sbr.rel (0) target = $region45
    $region44: #{tpu_custom_call.1} parent=1 // pred_region
      %98 = dma.done [#allocation9], 2048
    $region45: #{tpu_custom_call.1} parent=1 // pred_fallthru
      _
    // Predicated region
    $region46: #{tpu_custom_call.1} parent=1 // pred_check
      _
    $region47: #{tpu_custom_call.1} parent=1 // pred_check_branch
      %100 = sbr.rel (0) target = $region49
    $region48: #{tpu_custom_call.1} parent=1 // pred_region
      %102 = dma.done [#allocation9], 1024
    $region49: #{tpu_custom_call.1} parent=1 // pred_fallthru
      _
    %v103 = vld [vmem:[#allocation2] sm:$0xf]
    %v104 = vld [vmem:[#allocation2 + $0x4] sm:$0xf]
    %v105 = vld [vmem:[#allocation2 + $0x8] sm:$0xf]
    %v106 = vld [vmem:[#allocation2 + $0xc] sm:$0xf]
    %v107 = vld [vmem:[#allocation5] sm:$0xff]
    %v108 = vld [vmem:[#allocation5 + $0x8] sm:$0xff]
    %v109 = vld [vmem:[#allocation5 + $0x10] sm:$0xff]
    %v110 = vld [vmem:[#allocation5 + $0x18] sm:$0xff]
    %v111 = vld [vmem:[#allocation5 + $0x20] sm:$0xff]
    %v112 = vld [vmem:[#allocation5 + $0x28] sm:$0xff]
    %v113 = vld [vmem:[#allocation5 + $0x30] sm:$0xff]
    %v114 = vld [vmem:[#allocation5 + $0x38] sm:$0xff]
    %v115 = vld [vmem:[#allocation5 + $0x40] sm:$0xff]
    %v116 = vld [vmem:[#allocation5 + $0x48] sm:$0xff]
    %v117 = vld [vmem:[#allocation5 + $0x50] sm:$0xff]
    %v118 = vld [vmem:[#allocation5 + $0x58] sm:$0xff]
    %v119 = vld [vmem:[#allocation5 + $0x60] sm:$0xff]
    %v120 = vld [vmem:[#allocation5 + $0x68] sm:$0xff]
    %v121 = vld [vmem:[#allocation5 + $0x70] sm:$0xff]
    %v122 = vld [vmem:[#allocation5 + $0x78] sm:$0xff]
    %v123 = vld [vmem:[#allocation7] sm:$0x3]
    %v125 = vperm.slane %v123, 0
    %v126 = vperm.slane %v123, 1
    %v133 = vunpack.c.l.b16 %v103
    %v134 = vunpack.c.l.b16 %v104
    %v135 = vunpack.c.l.b16 %v105
    %v136 = vunpack.c.l.b16 %v106
    %v137 = vpack.c.b16 %v134, %v133
    %v138 = vpack.c.b16 %v136, %v135
    %v157 = vunpack.c.l.b16 %v107
    %v158 = vunpack.c.h.b16 %v107
    %v159 = vunpack.c.l.b16 %v108
    %v160 = vunpack.c.h.b16 %v108
    %v161 = vunpack.c.l.b16 %v109
    %v162 = vunpack.c.h.b16 %v109
    %v163 = vunpack.c.l.b16 %v110
    %v164 = vunpack.c.h.b16 %v110
    %v165 = vunpack.c.l.b16 %v111
    %v166 = vunpack.c.h.b16 %v111
    %v167 = vunpack.c.l.b16 %v112
    %v168 = vunpack.c.h.b16 %v112
    %v169 = vunpack.c.l.b16 %v113
    %v170 = vunpack.c.h.b16 %v113
    %v171 = vunpack.c.l.b16 %v114
    %v172 = vunpack.c.h.b16 %v114
    %v173 = vunpack.c.l.b16 %v115
    %v174 = vunpack.c.h.b16 %v115
    %v175 = vunpack.c.l.b16 %v116
    %v176 = vunpack.c.h.b16 %v116
    %v177 = vunpack.c.l.b16 %v117
    %v178 = vunpack.c.h.b16 %v117
    %v179 = vunpack.c.l.b16 %v118
    %v180 = vunpack.c.h.b16 %v118
    %v181 = vunpack.c.l.b16 %v119
    %v182 = vunpack.c.h.b16 %v119
    %v183 = vunpack.c.l.b16 %v120
    %v184 = vunpack.c.h.b16 %v120
    %v185 = vunpack.c.l.b16 %v121
    %v186 = vunpack.c.h.b16 %v121
    %v187 = vunpack.c.l.b16 %v122
    %v188 = vunpack.c.h.b16 %v122
    %v189 = vpack.c.b16 %v159, %v157
    %v190 = vpack.c.b16 %v160, %v158
    %v191 = vpack.c.b16 %v163, %v161
    %v192 = vpack.c.b16 %v164, %v162
    %v193 = vpack.c.b16 %v167, %v165
    %v194 = vpack.c.b16 %v168, %v166
    %v195 = vpack.c.b16 %v171, %v169
    %v196 = vpack.c.b16 %v172, %v170
    %v197 = vpack.c.b16 %v175, %v173
    %v198 = vpack.c.b16 %v176, %v174
    %v199 = vpack.c.b16 %v179, %v177
    %v200 = vpack.c.b16 %v180, %v178
    %v201 = vpack.c.b16 %v183, %v181
    %v202 = vpack.c.b16 %v184, %v182
    %v203 = vpack.c.b16 %v187, %v185
    %v204 = vpack.c.b16 %v188, %v186
    %221 = vmatpush.bf16.msra.mxu0 %v203
    %222 = vmatpush.bf16.msra.mxu0 %v201
    %223 = vmatpush.bf16.msra.mxu0 %v199
    %224 = vmatpush.bf16.msra.mxu0 %v197
    %225 = vmatpush.bf16.msra.mxu0 %v195
    %226 = vmatpush.bf16.msra.mxu0 %v193
    %227 = vmatpush.bf16.msra.mxu0 %v191
    %228 = vmatpush.bf16.msra.mxu0 %v189
    %229 = vmatmul.bf16.gmra.mxu0 %v137
    %v230 = vpop.f32.mrf.mxu0
    %v231 = vadd.f32 %v125, %v230
    %v232 = vpop.f32.mrf.mxu0
    %v233 = vadd.f32 %v125, %v232
    %234 = vmatmul.bf16.gmra.mxu0 %v138
    %v235 = vpop.f32.mrf.mxu0
    %v236 = vadd.f32 %v125, %v235
    %v237 = vpop.f32.mrf.mxu0
    %v238 = vadd.f32 %v125, %v237
    %239 = vdwg.mxu0
    %240 = vmatpush.bf16.msra.mxu0 %v204
    %241 = vmatpush.bf16.msra.mxu0 %v202
    %242 = vmatpush.bf16.msra.mxu0 %v200
    %243 = vmatpush.bf16.msra.mxu0 %v198
    %244 = vmatpush.bf16.msra.mxu0 %v196
    %245 = vmatpush.bf16.msra.mxu0 %v194
    %246 = vmatpush.bf16.msra.mxu0 %v192
    %247 = vmatpush.bf16.msra.mxu0 %v190
    %248 = vmatmul.bf16.gmra.mxu0 %v137
    %v249 = vpop.f32.mrf.mxu0
    %v250 = vadd.f32 %v126, %v249
    %v251 = vpop.f32.mrf.mxu0
    %v252 = vadd.f32 %v126, %v251
    %253 = vmatmul.bf16.gmra.mxu0 %v138
    %v254 = vpop.f32.mrf.mxu0
    %v255 = vadd.f32 %v126, %v254
    %v256 = vpop.f32.mrf.mxu0
    %v257 = vadd.f32 %v126, %v256
    %258 = vdwg.mxu0
    %v259 = vmax.f32 %v231, 0.0
    %v260 = vmax.f32 %v250, 0.0
    %v261 = vmax.f32 %v233, 0.0
    %v262 = vmax.f32 %v252, 0.0
    %v263 = vmax.f32 %v236, 0.0
    %v264 = vmax.f32 %v255, 0.0
    %v265 = vmax.f32 %v238, 0.0
    %v266 = vmax.f32 %v257, 0.0
    %v267 = vmin.f32 %v259, 6.0
    %v268 = vmin.f32 %v260, 6.0
    %v269 = vmin.f32 %v261, 6.0
    %v270 = vmin.f32 %v262, 6.0
    %v271 = vmin.f32 %v263, 6.0
    %v272 = vmin.f32 %v264, 6.0
    %v273 = vmin.f32 %v265, 6.0
    %v274 = vmin.f32 %v266, 6.0
    %v275 = vpack.c.bf16 %v269, %v267
    %v276 = vpack.c.bf16 %v270, %v268
    %v277 = vpack.c.bf16 %v273, %v271
    %v278 = vpack.c.bf16 %v274, %v272
    %v279 = vld [vmem:[#allocation8] sm:$0xf]
    %v280 = vld [vmem:[#allocation8 + $0x4] sm:$0xf]
    %v281 = vld [vmem:[#allocation8 + $0x8] sm:$0xf]
    %v282 = vld [vmem:[#allocation8 + $0xc] sm:$0xf]
    %v283 = vld [vmem:[#allocation8 + $0x10] sm:$0xf]
    %v284 = vld [vmem:[#allocation8 + $0x14] sm:$0xf]
    %v285 = vld [vmem:[#allocation8 + $0x18] sm:$0xf]
    %v286 = vld [vmem:[#allocation8 + $0x1c] sm:$0xf]
    %v287 = vld [vmem:[#allocation8 + $0x20] sm:$0xf]
    %v288 = vld [vmem:[#allocation8 + $0x24] sm:$0xf]
    %v289 = vld [vmem:[#allocation8 + $0x28] sm:$0xf]
    %v290 = vld [vmem:[#allocation8 + $0x2c] sm:$0xf]
    %v291 = vld [vmem:[#allocation8 + $0x30] sm:$0xf]
    %v292 = vld [vmem:[#allocation8 + $0x34] sm:$0xf]
    %v293 = vld [vmem:[#allocation8 + $0x38] sm:$0xf]
    %v294 = vld [vmem:[#allocation8 + $0x3c] sm:$0xf]
    %v295 = vld [vmem:[#allocation8 + $0x40] sm:$0xf]
    %v296 = vld [vmem:[#allocation8 + $0x44] sm:$0xf]
    %v297 = vld [vmem:[#allocation8 + $0x48] sm:$0xf]
    %v298 = vld [vmem:[#allocation8 + $0x4c] sm:$0xf]
    %v299 = vld [vmem:[#allocation8 + $0x50] sm:$0xf]
    %v300 = vld [vmem:[#allocation8 + $0x54] sm:$0xf]
    %v301 = vld [vmem:[#allocation8 + $0x58] sm:$0xf]
    %v302 = vld [vmem:[#allocation8 + $0x5c] sm:$0xf]
    %v303 = vld [vmem:[#allocation8 + $0x60] sm:$0xf]
    %v304 = vld [vmem:[#allocation8 + $0x64] sm:$0xf]
    %v305 = vld [vmem:[#allocation8 + $0x68] sm:$0xf]
    %v306 = vld [vmem:[#allocation8 + $0x6c] sm:$0xf]
    %v307 = vld [vmem:[#allocation8 + $0x70] sm:$0xf]
    %v308 = vld [vmem:[#allocation8 + $0x74] sm:$0xf]
    %v309 = vld [vmem:[#allocation8 + $0x78] sm:$0xf]
    %v310 = vld [vmem:[#allocation8 + $0x7c] sm:$0xf]
    %v311 = vld [vmem:[%s4] sm:$0x1]
    %v313 = vperm.slane %v311, 0
    %v347 = vunpack.c.l.b16 %v279
    %v348 = vunpack.c.l.b16 %v280
    %v349 = vunpack.c.l.b16 %v281
    %v350 = vunpack.c.l.b16 %v282
    %v351 = vunpack.c.l.b16 %v283
    %v352 = vunpack.c.l.b16 %v284
    %v353 = vunpack.c.l.b16 %v285
    %v354 = vunpack.c.l.b16 %v286
    %v355 = vunpack.c.l.b16 %v287
    %v356 = vunpack.c.l.b16 %v288
    %v357 = vunpack.c.l.b16 %v289
    %v358 = vunpack.c.l.b16 %v290
    %v359 = vunpack.c.l.b16 %v291
    %v360 = vunpack.c.l.b16 %v292
    %v361 = vunpack.c.l.b16 %v293
    %v362 = vunpack.c.l.b16 %v294
    %v363 = vunpack.c.l.b16 %v295
    %v364 = vunpack.c.l.b16 %v296
    %v365 = vunpack.c.l.b16 %v297
    %v366 = vunpack.c.l.b16 %v298
    %v367 = vunpack.c.l.b16 %v299
    %v368 = vunpack.c.l.b16 %v300
    %v369 = vunpack.c.l.b16 %v301
    %v370 = vunpack.c.l.b16 %v302
    %v371 = vunpack.c.l.b16 %v303
    %v372 = vunpack.c.l.b16 %v304
    %v373 = vunpack.c.l.b16 %v305
    %v374 = vunpack.c.l.b16 %v306
    %v375 = vunpack.c.l.b16 %v307
    %v376 = vunpack.c.l.b16 %v308
    %v377 = vunpack.c.l.b16 %v309
    %v378 = vunpack.c.l.b16 %v310
    %v379 = vpack.c.b16 %v348, %v347
    %v380 = vpack.c.b16 %v350, %v349
    %v381 = vpack.c.b16 %v352, %v351
    %v382 = vpack.c.b16 %v354, %v353
    %v383 = vpack.c.b16 %v356, %v355
    %v384 = vpack.c.b16 %v358, %v357
    %v385 = vpack.c.b16 %v360, %v359
    %v386 = vpack.c.b16 %v362, %v361
    %v387 = vpack.c.b16 %v364, %v363
    %v388 = vpack.c.b16 %v366, %v365
    %v389 = vpack.c.b16 %v368, %v367
    %v390 = vpack.c.b16 %v370, %v369
    %v391 = vpack.c.b16 %v372, %v371
    %v392 = vpack.c.b16 %v374, %v373
    %v393 = vpack.c.b16 %v376, %v375
    %v394 = vpack.c.b16 %v378, %v377
    %411 = vmatpush.bf16.msra.mxu0 %v386
    %412 = vmatpush.bf16.msra.mxu0 %v385
    %413 = vmatpush.bf16.msra.mxu0 %v384
    %414 = vmatpush.bf16.msra.mxu0 %v383
    %415 = vmatpush.bf16.msra.mxu0 %v382
    %416 = vmatpush.bf16.msra.mxu0 %v381
    %417 = vmatpush.bf16.msra.mxu0 %v380
    %418 = vmatpush.bf16.msra.mxu0 %v379
    %419 = vmatmul.bf16.gmra.mxu0 %v275
    %v420 = vpop.f32.mrf.mxu0
    %v421 = vadd.f32 %v313, %v420
    %v422 = vpop.f32.mrf.mxu0
    %v423 = vadd.f32 %v313, %v422
    %424 = vmatmul.bf16.gmra.mxu0 %v277
    %v425 = vpop.f32.mrf.mxu0
    %v426 = vadd.f32 %v313, %v425
    %v427 = vpop.f32.mrf.mxu0
    %v428 = vadd.f32 %v313, %v427
    %429 = vdwg.mxu0
    %430 = vmatpush.bf16.msra.mxu0 %v394
    %431 = vmatpush.bf16.msra.mxu0 %v393
    %432 = vmatpush.bf16.msra.mxu0 %v392
    %433 = vmatpush.bf16.msra.mxu0 %v391
    %434 = vmatpush.bf16.msra.mxu0 %v390
    %435 = vmatpush.bf16.msra.mxu0 %v389
    %436 = vmatpush.bf16.msra.mxu0 %v388
    %437 = vmatpush.bf16.msra.mxu0 %v387
    %438 = vmatmul.bf16.gmra.mxu0 %v276
    %v439 = vpop.f32.mrf.mxu0
    %v440 = vadd.f32 %v421, %v439
    %v441 = vpop.f32.mrf.mxu0
    %v442 = vadd.f32 %v423, %v441
    %443 = vmatmul.bf16.gmra.mxu0 %v278
    %v444 = vpop.f32.mrf.mxu0
    %v445 = vadd.f32 %v426, %v444
    %v446 = vpop.f32.mrf.mxu0
    %v447 = vadd.f32 %v428, %v446
    %448 = vdwg.mxu0
    %v449 = vmax.f32 %v440, 0.0
    %v450 = vmax.f32 %v442, 0.0
    %v451 = vmax.f32 %v445, 0.0
    %v452 = vmax.f32 %v447, 0.0
    %v453 = vmin.f32 %v449, 6.0
    %v454 = vmin.f32 %v450, 6.0
    %v455 = vmin.f32 %v451, 6.0
    %v456 = vmin.f32 %v452, 6.0
    %v457 = vpack.c.bf16 %v454, %v453
    %v458 = vpack.c.bf16 %v456, %v455
    %v459 = vld [vmem:[#allocation10] sm:$0xf]
    %v460 = vld [vmem:[#allocation10 + $0x4] sm:$0xf]
    %v461 = vld [vmem:[#allocation10 + $0x8] sm:$0xf]
    %v462 = vld [vmem:[#allocation10 + $0xc] sm:$0xf]
    %v463 = vld [vmem:[#allocation10 + $0x10] sm:$0xf]
    %v464 = vld [vmem:[#allocation10 + $0x14] sm:$0xf]
    %v465 = vld [vmem:[#allocation10 + $0x18] sm:$0xf]
    %v466 = vld [vmem:[#allocation10 + $0x1c] sm:$0xf]
    %v467 = vld [vmem:[#allocation10 + $0x20] sm:$0xf]
    %v468 = vld [vmem:[#allocation10 + $0x24] sm:$0xf]
    %v469 = vld [vmem:[#allocation10 + $0x28] sm:$0xf]
    %v470 = vld [vmem:[#allocation10 + $0x2c] sm:$0xf]
    %v471 = vld [vmem:[#allocation10 + $0x30] sm:$0xf]
    %v472 = vld [vmem:[#allocation10 + $0x34] sm:$0xf]
    %v473 = vld [vmem:[#allocation10 + $0x38] sm:$0xf]
    %v474 = vld [vmem:[#allocation10 + $0x3c] sm:$0xf]
    %v475 = vld [vmem:[%s6] sm:$0x1]
    %v477 = vperm.slane %v475, 0
    %v495 = vunpack.c.l.b16 %v459
    %v496 = vunpack.c.l.b16 %v460
    %v497 = vunpack.c.l.b16 %v461
    %v498 = vunpack.c.l.b16 %v462
    %v499 = vunpack.c.l.b16 %v463
    %v500 = vunpack.c.l.b16 %v464
    %v501 = vunpack.c.l.b16 %v465
    %v502 = vunpack.c.l.b16 %v466
    %v503 = vunpack.c.l.b16 %v467
    %v504 = vunpack.c.l.b16 %v468
    %v505 = vunpack.c.l.b16 %v469
    %v506 = vunpack.c.l.b16 %v470
    %v507 = vunpack.c.l.b16 %v471
    %v508 = vunpack.c.l.b16 %v472
    %v509 = vunpack.c.l.b16 %v473
    %v510 = vunpack.c.l.b16 %v474
    %v511 = vpack.c.b16 %v496, %v495
    %v512 = vpack.c.b16 %v498, %v497
    %v513 = vpack.c.b16 %v500, %v499
    %v514 = vpack.c.b16 %v502, %v501
    %v515 = vpack.c.b16 %v504, %v503
    %v516 = vpack.c.b16 %v506, %v505
    %v517 = vpack.c.b16 %v508, %v507
    %v518 = vpack.c.b16 %v510, %v509
    %527 = vmatpush.bf16.msra.mxu0 %v518
    %528 = vmatpush.bf16.msra.mxu0 %v517
    %529 = vmatpush.bf16.msra.mxu0 %v516
    %530 = vmatpush.bf16.msra.mxu0 %v515
    %531 = vmatpush.bf16.msra.mxu0 %v514
    %532 = vmatpush.bf16.msra.mxu0 %v513
    %533 = vmatpush.bf16.msra.mxu0 %v512
    %534 = vmatpush.bf16.msra.mxu0 %v511
    %535 = vmatmul.bf16.gmra.mxu0 %v457
    %v536 = vpop.f32.mrf.mxu0
    %v537 = vadd.f32 %v477, %v536
    %v538 = vpop.f32.mrf.mxu0
    %v539 = vadd.f32 %v477, %v538
    %540 = vmatmul.bf16.gmra.mxu0 %v458
    %v541 = vpop.f32.mrf.mxu0
    %v542 = vadd.f32 %v477, %v541
    %v543 = vpop.f32.mrf.mxu0
    %v544 = vadd.f32 %v477, %v543
    %545 = vdwg.mxu0
    %v546 = vsub.f32 0.0, %v537
    %v547 = vsub.f32 0.0, %v539
    %v548 = vsub.f32 0.0, %v542
    %v549 = vsub.f32 0.0, %v544
    %v550 = vmul.f32 %v546, 1.442695
    %v551 = vpow.pop %v550
    %v552 = vmul.f32 %v547, 1.442695
    %v553 = vpow.pop %v552
    %v554 = vmul.f32 %v548, 1.442695
    %v555 = vpow.pop %v554
    %v556 = vmul.f32 %v549, 1.442695
    %v557 = vpow.pop %v556
    %v558 = vadd.f32 %v551, 1.0
    %v559 = vadd.f32 %v553, 1.0
    %v560 = vadd.f32 %v555, 1.0
    %v561 = vadd.f32 %v557, 1.0
    %v562 = vrcp.pop %v558
    %v563 = vrcp.pop %v559
    %v564 = vrcp.pop %v560
    %v565 = vrcp.pop %v561
    %566 = vst [vmem:[#allocation11] sm:$0xff] %v562
    %567 = vst [vmem:[#allocation11 + $0x8] sm:$0xff] %v563
    %568 = vst [vmem:[#allocation11 + $0x10] sm:$0xff] %v564
    %569 = vst [vmem:[#allocation11 + $0x18] sm:$0xff] %v565
    // Predicated region
    $region50: #{tpu_custom_call.1} parent=1 // pred_check
      _
    $region51: #{tpu_custom_call.1} parent=1 // pred_check_branch
      %571 = sbr.rel (0) target = $region53
    $region52: #{tpu_custom_call.1} parent=1 // pred_region
      %573 = vsyncadd [#allocation4], 0
      %s574 = sshll.u32 [#allocation11], 4
      %s575 = int_to_ptr.vmem [resolvable:$true] %s574
      %s576 = sshll.u32 %s7, 4
      %s577 = int_to_ptr.hbm [resolvable:$true] %s576
      %582 = dma.vmem_to_hbm [thread:$0]  %s575, 512, %s577, [#allocation4], 128, 128, 8
    $region53: #{tpu_custom_call.1} parent=1 // pred_fallthru
      _
    // Predicated region
    $region54: #{tpu_custom_call.1} parent=1 // pred_check
      _
    $region55: #{tpu_custom_call.1} parent=1 // pred_check_branch
      %584 = sbr.rel (0) target = $region57
    $region56: #{tpu_custom_call.1} parent=1 // pred_region
      %586 = dma.done [#allocation4], 512
    $region57: #{tpu_custom_call.1} parent=1 // pred_fallthru
      _
    %587 = vsyncpa [#allocation3], 1
    %588 = vsyncpa [#allocation6], 1
    %589 = vsyncpa [#allocation9], 1
    %590 = vsyncpa [#allocation4], 1

</llo_original>
